<compile_context>
chip_gen: v6e
topology: v6e:2x2x1
jax: 0.10.0
libtpu: 0.0.40
codegen_flags: <defaults>
</compile_context>

<pallas_src>
import jax
import jax.numpy as jnp
from jax.experimental import pallas as pl
from jax.experimental.pallas import tpu as pltpu

# ----------------------------- model hyper-params -----------------------------
FRAME_LEN = 256      # samples per analysis frame (stand-in for SincNet receptive field)
FEAT_DIM = 128       # frontend feature dim
HIDDEN_DIM = 128     # MLP hidden dim
NUM_SPEAKERS = 4     # number of real speaker activation outputs
SPK_PAD = 128        # speaker head padded to a full 128-lane output (lane-dense stores)
TILE_F = 2048        # max frames (rows) processed per grid step
ROW_ALIGN = 16       # row tile alignment (bf16 output sublane packing)


def _round_up(x, m):
    return ((x + m - 1) // m) * m


# ------------------------------- Pallas kernel --------------------------------
def _diarization_kernel(frames_ref, wf_ref, w1_ref, b1_ref, w2_ref, b2_ref,
                        act_ref, spk_ref, active_ref):
    """Fused: frames -> bf16 -> @Wf -> ReLU -> @W1+b1 -> ReLU -> @W2+b2
              -> (sigmoid activations, per-frame argmax, per-frame active flag).

    frames_ref: (tile, FRAME_LEN)  f32 VMEM (Hann window pre-folded into Wf)
    wf_ref:     (FRAME_LEN, FEAT)  bf16 VMEM
    w1_ref:     (FEAT, HIDDEN)     bf16 VMEM
    b1_ref:     (1, HIDDEN)        f32  VMEM
    w2_ref:     (HIDDEN, SPK_PAD)  bf16 VMEM (zero-padded beyond NUM_SPEAKERS)
    b2_ref:     (1, SPK_PAD)       f32  VMEM (zero-padded)
    act_ref:    (tile, SPK_PAD)    bf16 VMEM  sigmoid activations (padded lanes junk)
    spk_ref:    (tile, 1)          i32  VMEM  argmax speaker over real lanes
    active_ref: (tile, 1)          i32  VMEM  1 if max activation > 0.5 else 0
    """
    # f32 -> bf16 cast inside the kernel (VPU work hidden under the frames DMA).
    frames = frames_ref[...].astype(jnp.bfloat16)

    # Frontend "conv" (framed waveform x learned, windowed filter bank) on the MXU.
    feats = jnp.dot(frames, wf_ref[...], preferred_element_type=jnp.float32)
    feats = jnp.maximum(feats, 0.0).astype(jnp.bfloat16)

    # Hidden layer.
    h = jnp.dot(feats, w1_ref[...], preferred_element_type=jnp.float32) + b1_ref[...]
    h = jnp.maximum(h, 0.0).astype(jnp.bfloat16)

    # Speaker-activation head (lane-padded to 128 outputs).
    logits = jnp.dot(h, w2_ref[...], preferred_element_type=jnp.float32) + b2_ref[...]

    # Activation output: bf16, lane-dense 128-wide stores (cols >= NUM_SPEAKERS are
    # padding and are sliced off before anything downstream uses them).
    act_ref[...] = jax.nn.sigmoid(logits).astype(jnp.bfloat16)

    # Decision path fused in-kernel, on the raw logits:
    #   argmax(sigmoid(x)) == argmax(x) and sigmoid(x) > 0.5  <=>  x > 0.
    # Padded speaker lanes are masked out so they can never win.
    lane = jax.lax.broadcasted_iota(jnp.int32, logits.shape, 1)
    masked = jnp.where(lane < NUM_SPEAKERS, logits, jnp.float32(-1e30))
    max_logit = jnp.max(masked, axis=-1, keepdims=True)               # (tile, 1)
    is_max = masked >= max_logit
    lane_f = lane.astype(jnp.float32)
    spk_f = jnp.min(jnp.where(is_max, lane_f, jnp.float32(SPK_PAD)),
                    axis=-1, keepdims=True)                           # first-match argmax
    spk_ref[...] = spk_f.astype(jnp.int32)
    active_ref[...] = (max_logit > 0.0).astype(jnp.int32)


def diarization_activations(frames_f32, wf, w1, b1, w2, b2):
    """Run the fused, frame-tiled diarization kernel.

    frames_f32: (F, FRAME_LEN) f32.
    Returns (acts (F, NUM_SPEAKERS) f32, spk_idx (F,) i32, active (F,) i32).
    """
    num_frames = frames_f32.shape[0]

    # Tile the frame axis.  Guarantee >= 2 grid steps whenever the input allows
    # it so v7x's two TensorCores both get work ("parallel" axis); amortize the
    # per-step overhead with tiles up to TILE_F rows.
    n_steps = max(2 if num_frames >= 2 * ROW_ALIGN else 1,
                  pl.cdiv(num_frames, TILE_F))
    tile = _round_up(pl.cdiv(num_frames, n_steps), ROW_ALIGN)
    f_pad = _round_up(num_frames, tile)
    if f_pad != num_frames:
        frames_f32 = jnp.pad(frames_f32, ((0, f_pad - num_frames), (0, 0)))
    grid = (f_pad // tile,)

    # Weights/biases are grid-invariant (index_map always (0,0)), so they are
    # DMA'd once and stay VMEM-resident across grid steps.
    const = lambda shape: pl.BlockSpec(shape, lambda i: (0, 0))

    flops = 2 * f_pad * (FRAME_LEN * FEAT_DIM + FEAT_DIM * HIDDEN_DIM + HIDDEN_DIM * SPK_PAD)
    bytes_accessed = (
        f_pad * FRAME_LEN * 4                       # frames (f32) in
        + f_pad * SPK_PAD * 2                       # activations (bf16) out
        + f_pad * 2 * 4                             # spk idx + active flag (i32) out
        + (FRAME_LEN * FEAT_DIM + FEAT_DIM * HIDDEN_DIM + HIDDEN_DIM * SPK_PAD) * 2
        + (HIDDEN_DIM + SPK_PAD) * 4                # biases
    )

    acts_pad, spk_pad, active_pad = pl.pallas_call(
        _diarization_kernel,
        out_shape=(
            jax.ShapeDtypeStruct((f_pad, SPK_PAD), jnp.bfloat16),
            jax.ShapeDtypeStruct((f_pad, 1), jnp.int32),
            jax.ShapeDtypeStruct((f_pad, 1), jnp.int32),
        ),
        grid=grid,
        in_specs=[
            pl.BlockSpec((tile, FRAME_LEN), lambda i: (i, 0)),   # frames: tiled over F
            const(wf.shape),                                     # weights: VMEM-resident
            const(w1.shape),
            const(b1.shape),
            const(w2.shape),
            const(b2.shape),
        ],
        out_specs=[
            pl.BlockSpec((tile, SPK_PAD), lambda i: (i, 0)),
            pl.BlockSpec((tile, 1), lambda i: (i, 0)),
            pl.BlockSpec((tile, 1), lambda i: (i, 0)),
        ],
        compiler_params=pltpu.CompilerParams(
            dimension_semantics=("parallel",),        # megacore shard on v7x
            vmem_limit_bytes=48 * 1024 * 1024,        # safe within v7x's 64 MiB physical VMEM
        ),
        cost_estimate=pl.CostEstimate(
            flops=flops,
            transcendentals=int(f_pad * SPK_PAD),
            bytes_accessed=bytes_accessed,
        ),
    )(frames_f32, wf, w1, b1, w2, b2)

    # Drop row padding and the padded speaker columns (tiny slices).  Padded-row
    # decisions (zero frames) are also dropped here.
    acts = acts_pad[:num_frames, :NUM_SPEAKERS].astype(jnp.float32)
    spk_idx = spk_pad[:num_frames, 0]
    active = active_pad[:num_frames, 0]
    return acts, spk_idx, active


# ------------------------------ host-side glue ---------------------------------
def init_params(key):
    """Deterministic synthetic weights, pre-folded / pre-padded / bf16-cast for the kernel."""
    k_wf, k_w1, k_b1, k_w2, k_b2 = jax.random.split(key, 5)
    scale = 0.05
    wf = scale * jax.random.normal(k_wf, (FRAME_LEN, FEAT_DIM), jnp.float32)
    w1 = scale * jax.random.normal(k_w1, (FEAT_DIM, HIDDEN_DIM), jnp.float32)
    b1 = scale * jax.random.normal(k_b1, (1, HIDDEN_DIM), jnp.float32)
    w2 = scale * jax.random.normal(k_w2, (HIDDEN_DIM, NUM_SPEAKERS), jnp.float32)
    b2 = scale * jax.random.normal(k_b2, (1, NUM_SPEAKERS), jnp.float32)

    # Fold the per-sample Hann window into the frontend weights:
    #   (frames * window) @ wf == frames @ (wf * window[:, None])
    window = 0.5 - 0.5 * jnp.cos(
        2.0 * jnp.pi * jnp.arange(FRAME_LEN, dtype=jnp.float32) / FRAME_LEN
    )
    wf = wf * window[:, None]

    # Pad the speaker head to a full 128-lane output (extra cols/biases are zero).
    w2 = jnp.pad(w2, ((0, 0), (0, SPK_PAD - NUM_SPEAKERS)))
    b2 = jnp.pad(b2, ((0, 0), (0, SPK_PAD - NUM_SPEAKERS)))

    return dict(
        wf=wf.astype(jnp.bfloat16),
        w1=w1.astype(jnp.bfloat16),
        b1=b1,                               # f32
        w2=w2.astype(jnp.bfloat16),
        b2=b2,                               # f32
    )


def forward(signal, sample_rate, params, extra=None):
    """Mirror of PyannoteDiarizationModel.forward.

    signal: (num_samples, num_channels) float32; sample_rate: python int.
    Returns (activations, transcript) where transcript is a list of
    dict(begin=..., end=..., speaker_name=..., **extra) turns.
    """
    extra = {} if extra is None else extra

    # Channel select (the PyTorch module transposes to (channels, samples); we
    # just take channel 0 directly — no full-array transpose).
    wave = signal[:, 0]

    # Frame the waveform (non-overlapping frames).  The Hann window is already
    # folded into params['wf'].  Frames stay f32: the bf16 cast happens in-kernel.
    num_frames = wave.shape[0] // FRAME_LEN
    if num_frames == 0:
        # Signal shorter than one frame: nothing to diarize.
        return jnp.zeros((0, NUM_SPEAKERS), jnp.float32), []
    frames = wave[: num_frames * FRAME_LEN].reshape(num_frames, FRAME_LEN)

    # Hot path: fused, frame-tiled matmul chain + sigmoid + per-frame decisions.
    acts, spk_idx, active = diarization_activations(
        frames, params["wf"], params["w1"], params["b1"], params["w2"], params["b2"]
    )

    # Only two tiny per-frame vectors cross to host.
    spk_host, active_host = jax.device_get((spk_idx, active))

    # TODO(synk): the real pyannote pipeline does VAD + embedding extraction +
    # clustering before `itertracks`; here we emit one turn per contiguous run of
    # frames whose argmax speaker activation exceeds 0.5 (plain-Python glue).
    frame_dur = FRAME_LEN / float(sample_rate)
    transcript = []
    current = None  # (speaker_idx, start_frame)
    for f in range(num_frames):
        spk = int(spk_host[f])
        is_active = bool(active_host[f])
        if is_active and current is not None and current[0] == spk:
            continue
        if current is not None:
            s, start = current
            transcript.append(
                dict(begin=start * frame_dur, end=f * frame_dur,
                     speaker_name=f"SPEAKER_{s:02d}", **extra)
            )
            current = None
        if is_active:
            current = (spk, f)
    if current is not None:
        s, start = current
        transcript.append(
            dict(begin=start * frame_dur, end=num_frames * frame_dur,
                 speaker_name=f"SPEAKER_{s:02d}", **extra)
        )
    return acts, transcript


if __name__ == "__main__":
    key = jax.random.PRNGKey(0)
    k_sig, k_par = jax.random.split(key)

    num_samples = 2048       # 8 frames of 256 samples
    num_channels = 1
    sample_rate = 16000

    signal = jax.random.normal(k_sig, (num_samples, num_channels), dtype=jnp.float32)
    params = init_params(k_par)

    acts, transcript = forward(signal, sample_rate, params, extra={"source": "synthetic"})
    jax.block_until_ready(acts)

    assert acts.shape == (num_samples // FRAME_LEN, NUM_SPEAKERS)
    assert acts.dtype == jnp.float32
    assert bool(jnp.all((acts >= 0.0) & (acts <= 1.0)))
    assert isinstance(transcript, list)

    print("KERNEL_OK")
</pallas_src>

<mosaic_0001>
module attributes {stable_mosaic.version = 11 : i64} {
  func.func @_diarization_kernel(%arg0: i32, %arg1: memref<16x256xf32, #tpu.memory_space<vmem>>, %arg2: memref<256x128xbf16, #tpu.memory_space<vmem>>, %arg3: memref<128x128xbf16, #tpu.memory_space<vmem>>, %arg4: memref<1x128xf32, #tpu.memory_space<vmem>>, %arg5: memref<128x128xbf16, #tpu.memory_space<vmem>>, %arg6: memref<1x128xf32, #tpu.memory_space<vmem>>, %arg7: memref<16x128xbf16, #tpu.memory_space<vmem>>, %arg8: memref<16x1xi32, #tpu.memory_space<vmem>>, %arg9: memref<16x1xi32, #tpu.memory_space<vmem>>) attributes {dimension_semantics = [#tpu.dimension_semantics<parallel>], iteration_bounds = array<i64: 1>, scalar_prefetch = 0 : i64, scratch_operands = 0 : i64, tpu.core_type = #tpu.core_type<tc>, window_params = [{transform_indices = @transform_0, window_bounds = array<i64: 16, 256>}, {pipeline_mode = #tpu.pipeline_mode<synchronous>, transform_indices = @transform_1, window_bounds = array<i64: 256, 128>}, {pipeline_mode = #tpu.pipeline_mode<synchronous>, transform_indices = @transform_2, window_bounds = array<i64: 128, 128>}, {pipeline_mode = #tpu.pipeline_mode<synchronous>, transform_indices = @transform_3, window_bounds = array<i64: 1, 128>}, {pipeline_mode = #tpu.pipeline_mode<synchronous>, transform_indices = @transform_4, window_bounds = array<i64: 128, 128>}, {pipeline_mode = #tpu.pipeline_mode<synchronous>, transform_indices = @transform_5, window_bounds = array<i64: 1, 128>}, {transform_indices = @transform_6, window_bounds = array<i64: 16, 128>}, {transform_indices = @transform_7, window_bounds = array<i64: 16, 1>}, {transform_indices = @transform_8, window_bounds = array<i64: 16, 1>}]} {
    %c0 = arith.constant 0 : index
    %c0_0 = arith.constant 0 : index
    %0 = vector.load %arg1[%c0, %c0_0] : memref<16x256xf32, #tpu.memory_space<vmem>>, vector<16x256xf32>
    %1 = arith.truncf %0 : vector<16x256xf32> to vector<16x256xbf16>
    %c0_1 = arith.constant 0 : index
    %c0_2 = arith.constant 0 : index
    %2 = vector.load %arg2[%c0_1, %c0_2] : memref<256x128xbf16, #tpu.memory_space<vmem>>, vector<256x128xbf16>
    %cst = arith.constant dense<0.000000e+00> : vector<16x128xf32>
    %3 = tpu.matmul %1, %2, %cst {dimension_numbers = #tpu.dot_dimension_numbers<[1], [0], [0], [1], [0, 0, 1, 1], [], []>} : vector<16x256xbf16>, vector<256x128xbf16>, vector<16x128xf32> -> vector<16x128xf32>
    %cst_3 = arith.constant 0.000000e+00 : f32
    %4 = vector.broadcast %cst_3 : f32 to vector<16x128xf32>
    %5 = arith.maximumf %3, %4 : vector<16x128xf32>
    %6 = arith.truncf %5 : vector<16x128xf32> to vector<16x128xbf16>
    %c0_4 = arith.constant 0 : index
    %c0_5 = arith.constant 0 : index
    %7 = vector.load %arg3[%c0_4, %c0_5] : memref<128x128xbf16, #tpu.memory_space<vmem>>, vector<128x128xbf16>
    %cst_6 = arith.constant dense<0.000000e+00> : vector<16x128xf32>
    %8 = tpu.matmul %6, %7, %cst_6 {dimension_numbers = #tpu.dot_dimension_numbers<[1], [0], [0], [1], [0, 0, 1, 1], [], []>} : vector<16x128xbf16>, vector<128x128xbf16>, vector<16x128xf32> -> vector<16x128xf32>
    %c0_7 = arith.constant 0 : index
    %c0_8 = arith.constant 0 : index
    %9 = vector.load %arg4[%c0_7, %c0_8] : memref<1x128xf32, #tpu.memory_space<vmem>>, vector<1x128xf32>
    %10 = vector.broadcast %9 : vector<1x128xf32> to vector<16x128xf32>
    %11 = arith.addf %8, %10 : vector<16x128xf32>
    %cst_9 = arith.constant 0.000000e+00 : f32
    %12 = vector.broadcast %cst_9 : f32 to vector<16x128xf32>
    %13 = arith.maximumf %11, %12 : vector<16x128xf32>
    %14 = arith.truncf %13 : vector<16x128xf32> to vector<16x128xbf16>
    %c0_10 = arith.constant 0 : index
    %c0_11 = arith.constant 0 : index
    %15 = vector.load %arg5[%c0_10, %c0_11] : memref<128x128xbf16, #tpu.memory_space<vmem>>, vector<128x128xbf16>
    %cst_12 = arith.constant dense<0.000000e+00> : vector<16x128xf32>
    %16 = tpu.matmul %14, %15, %cst_12 {dimension_numbers = #tpu.dot_dimension_numbers<[1], [0], [0], [1], [0, 0, 1, 1], [], []>} : vector<16x128xbf16>, vector<128x128xbf16>, vector<16x128xf32> -> vector<16x128xf32>
    %c0_13 = arith.constant 0 : index
    %c0_14 = arith.constant 0 : index
    %17 = vector.load %arg6[%c0_13, %c0_14] : memref<1x128xf32, #tpu.memory_space<vmem>>, vector<1x128xf32>
    %18 = vector.broadcast %17 : vector<1x128xf32> to vector<16x128xf32>
    %19 = arith.addf %16, %18 : vector<16x128xf32>
    %20 = arith.negf %19 : vector<16x128xf32>
    %21 = math.exp %20 : vector<16x128xf32>
    %cst_15 = arith.constant 1.000000e+00 : f32
    %22 = vector.broadcast %cst_15 : f32 to vector<16x128xf32>
    %23 = arith.addf %22, %21 : vector<16x128xf32>
    %24 = arith.divf %22, %23 : vector<16x128xf32>
    %25 = arith.truncf %24 : vector<16x128xf32> to vector<16x128xbf16>
    %c0_16 = arith.constant 0 : index
    %c0_17 = arith.constant 0 : index
    %26 = vector.load %arg7[%c0_16, %c0_17] : memref<16x128xbf16, #tpu.memory_space<vmem>>, vector<16x128xbf16>
    tpu.vector_store %arg7[%c0_16, %c0_17], %25 {strides = array<i32>} : memref<16x128xbf16, #tpu.memory_space<vmem>>, vector<16x128xbf16>,
    %27 = tpu.iota {dimensions = array<i32: 1>} : vector<16x128xi32>
    %c4_i32 = arith.constant 4 : i32
    %28 = vector.broadcast %c4_i32 : i32 to vector<16x128xi32>
    %29 = arith.cmpi slt, %27, %28 : vector<16x128xi32>
    %cst_18 = arith.constant -1.000000e+30 : f32
    %30 = vector.broadcast %cst_18 : f32 to vector<16x128xf32>
    %31 = arith.select %29, %19, %30 : vector<16x128xi1>, vector<16x128xf32>
    %cst_19 = arith.constant dense<0xFF800000> : vector<16xf32>
    %32 = vector.multi_reduction <maximumf>, %31, %cst_19 [1] : vector<16x128xf32> to vector<16xf32>
    %33 = vector.shape_cast %32 : vector<16xf32> to vector<16x1xf32>
    %34 = vector.broadcast %33 : vector<16x1xf32> to vector<16x128xf32>
    %35 = arith.cmpf oge, %31, %34 : vector<16x128xf32>
    %36 = arith.sitofp %27 : vector<16x128xi32> to vector<16x128xf32>
    %cst_20 = arith.constant 1.280000e+02 : f32
    %37 = vector.broadcast %cst_20 : f32 to vector<16x128xf32>
    %38 = arith.select %35, %36, %37 : vector<16x128xi1>, vector<16x128xf32>
    %cst_21 = arith.constant dense<0x7F800000> : vector<16xf32>
    %39 = vector.multi_reduction <minimumf>, %38, %cst_21 [1] : vector<16x128xf32> to vector<16xf32>
    %40 = vector.shape_cast %39 : vector<16xf32> to vector<16x1xf32>
    %41 = arith.fptosi %40 : vector<16x1xf32> to vector<16x1xi32>
    %c0_22 = arith.constant 0 : index
    %c0_23 = arith.constant 0 : index
    %42 = vector.load %arg8[%c0_22, %c0_23] : memref<16x1xi32, #tpu.memory_space<vmem>>, vector<16x1xi32>
    tpu.vector_store %arg8[%c0_22, %c0_23], %41 {strides = array<i32>} : memref<16x1xi32, #tpu.memory_space<vmem>>, vector<16x1xi32>,
    %cst_24 = arith.constant 0.000000e+00 : f32
    %43 = vector.broadcast %cst_24 : f32 to vector<16x1xf32>
    %44 = arith.cmpf ogt, %33, %43 : vector<16x1xf32>
    %45 = arith.extui %44 : vector<16x1xi1> to vector<16x1xi32>
    %c0_25 = arith.constant 0 : index
    %c0_26 = arith.constant 0 : index
    %46 = vector.load %arg9[%c0_25, %c0_26] : memref<16x1xi32, #tpu.memory_space<vmem>>, vector<16x1xi32>
    tpu.vector_store %arg9[%c0_25, %c0_26], %45 {strides = array<i32>} : memref<16x1xi32, #tpu.memory_space<vmem>>, vector<16x1xi32>,
    return
  }
  func.func @transform_0(%arg0: i32) -> (i32, i32) {
    %c0_i32 = arith.constant 0 : i32
    %c0_i32_0 = arith.constant 0 : i32
    return %arg0, %c0_i32 : i32, i32
  }
  func.func @transform_1(%arg0: i32) -> (i32, i32) {
    %c0_i32 = arith.constant 0 : i32
    %c0_i32_0 = arith.constant 0 : i32
    %c0_i32_1 = arith.constant 0 : i32
    return %c0_i32, %c0_i32_0 : i32, i32
  }
  func.func @transform_2(%arg0: i32) -> (i32, i32) {
    %c0_i32 = arith.constant 0 : i32
    %c0_i32_0 = arith.constant 0 : i32
    %c0_i32_1 = arith.constant 0 : i32
    return %c0_i32, %c0_i32_0 : i32, i32
  }
  func.func @transform_3(%arg0: i32) -> (i32, i32) {
    %c0_i32 = arith.constant 0 : i32
    %c0_i32_0 = arith.constant 0 : i32
    %c0_i32_1 = arith.constant 0 : i32
    return %c0_i32, %c0_i32_0 : i32, i32
  }
  func.func @transform_4(%arg0: i32) -> (i32, i32) {
    %c0_i32 = arith.constant 0 : i32
    %c0_i32_0 = arith.constant 0 : i32
    %c0_i32_1 = arith.constant 0 : i32
    return %c0_i32, %c0_i32_0 : i32, i32
  }
  func.func @transform_5(%arg0: i32) -> (i32, i32) {
    %c0_i32 = arith.constant 0 : i32
    %c0_i32_0 = arith.constant 0 : i32
    %c0_i32_1 = arith.constant 0 : i32
    return %c0_i32, %c0_i32_0 : i32, i32
  }
  func.func @transform_6(%arg0: i32) -> (i32, i32) {
    %c0_i32 = arith.constant 0 : i32
    %c0_i32_0 = arith.constant 0 : i32
    return %arg0, %c0_i32 : i32, i32
  }
  func.func @transform_7(%arg0: i32) -> (i32, i32) {
    %c0_i32 = arith.constant 0 : i32
    %c0_i32_0 = arith.constant 0 : i32
    return %arg0, %c0_i32 : i32, i32
  }
  func.func @transform_8(%arg0: i32) -> (i32, i32) {
    %c0_i32 = arith.constant 0 : i32
    %c0_i32_0 = arith.constant 0 : i32
    return %arg0, %c0_i32 : i32, i32
  }
}

</mosaic_0001>

<llo_original>
// kernel: tpu_custom_call.1
$region0: #{tpu_custom_call.1}
  #allocation0 [shape = 'u32[]', space=smem, size = 0x4, offset = 0x4, fixed_abs, tag = 'smem constant byte address 0x4 - core index']
  #allocation1 [shape = 'u32[144,128]{1,0:T(1,128)}', space=vmem, size = 0x12000, scoped, tag = 'internal scratch']
  %s0 = inlined_call_operand.hbm [shape: f32[16,256], index: 0, kind: input, shape index: {}]
  %s1 = inlined_call_operand.hbm [shape: bf16[256,128], index: 1, kind: input, shape index: {}]
  %s2 = inlined_call_operand.hbm [shape: bf16[128,128], index: 2, kind: input, shape index: {}]
  %s3 = inlined_call_operand.vmem [shape: f32[1,128], index: 3, kind: input, shape index: {}]
  %s4 = inlined_call_operand.hbm [shape: bf16[128,128], index: 4, kind: input, shape index: {}]
  %s5 = inlined_call_operand.vmem [shape: f32[1,128], index: 5, kind: input, shape index: {}]
  %s6 = inlined_call_operand.hbm [shape: bf16[16,128], index: 6, kind: output, shape index: {0}]
  %s7 = inlined_call_operand.vmem [shape: s32[16,1], index: 7, kind: output, shape index: {1}]
  %s8 = inlined_call_operand.vmem [shape: s32[16,1], index: 8, kind: output, shape index: {2}]
  %9 = xla_tuple %s6, %s7, %s8
  %s10 = sld [smem:[#allocation0]]
  $region66: #{tpu_custom_call.1} parent=0
    _
  %s12 = ssub.s32 1, %s10
  %s13 = scalar_select 0, %s12, %s10
  $region1: #{tpu_custom_call.1} parent=0
    #allocation2 [shape = 'u8[16384]{0}', space=vmem, size = 0x4000, scoped, tag = 'input window, operand 0, single buffered']
    #allocation3 [shape = 's32[1]{0}', space=sflag, size = 0x4, scoped, tag = 'scoped memory for tpu_custom_call.1']
    #allocation4 [shape = 's32[1]{0}', space=sflag, size = 0x4, scoped, tag = 'scoped memory for tpu_custom_call.1']
    #allocation5 [shape = 'u8[65536]{0}', space=vmem, size = 0x10000, scoped, tag = 'input window, operand 1, single buffered']
    #allocation6 [shape = 's32[1]{0}', space=sflag, size = 0x4, scoped, tag = 'scoped memory for tpu_custom_call.1']
    #allocation7 [shape = 'u8[32768]{0}', space=vmem, size = 0x8000, scoped, tag = 'input window, operand 2, single buffered']
    #allocation8 [shape = 'u8[32768]{0}', space=vmem, size = 0x8000, scoped, tag = 'input window, operand 4, single buffered']
    #allocation9 [shape = 's32[1]{0}', space=sflag, size = 0x4, scoped, tag = 'scoped memory for tpu_custom_call.1']
    #allocation10 [shape = 'u8[4096]{0}', space=vmem, size = 0x1000, scoped, tag = 'output window, operand 0, single buffered']
    %14 = vsyncpa [#allocation3], 0
    %15 = vsyncpa [#allocation6], 0
    %16 = vsyncpa [#allocation9], 0
    %17 = vsyncpa [#allocation4], 0
    // Predicated region
    $region2: #{tpu_custom_call.1} parent=1 // pred_check
      _
    $region3: #{tpu_custom_call.1} parent=1 // pred_check_branch
      %19 = sbr.rel (0) target = $region5
    $region4: #{tpu_custom_call.1} parent=1 // pred_region
      %s21 = ssub.s32 512, 512
      %22 = vsyncadd [#allocation3], %s21
      %s23 = sshll.u32 [#allocation2], 4
      %s24 = int_to_ptr.vmem [resolvable:$true] %s23
      %29 = dma.hbm_to_vmem [thread:$0]  %s0, 512, %s24, [#allocation3], 256, 256, 16
    $region5: #{tpu_custom_call.1} parent=1 // pred_fallthru
      _
    // Predicated region
    $region6: #{tpu_custom_call.1} parent=1 // pred_check
      _
    $region7: #{tpu_custom_call.1} parent=1 // pred_check_branch
      %31 = sbr.rel (0) target = $region9
    $region8: #{tpu_custom_call.1} parent=1 // pred_region
      %s33 = ssub.s32 2048, 2048
      %34 = vsyncadd [#allocation6], %s33
      %s35 = sshll.u32 [#allocation5], 4
      %s36 = int_to_ptr.vmem [resolvable:$true] %s35
      %41 = dma.hbm_to_vmem [thread:$0]  %s1, 2048, %s36, [#allocation6], 64, 64, 4
    $region9: #{tpu_custom_call.1} parent=1 // pred_fallthru
      _
    // Predicated region
    $region10: #{tpu_custom_call.1} parent=1 // pred_check
      _
    $region11: #{tpu_custom_call.1} parent=1 // pred_check_branch
      %43 = sbr.rel (0) target = $region13
    $region12: #{tpu_custom_call.1} parent=1 // pred_region
      %s45 = ssub.s32 1024, 1024
      %46 = vsyncadd [#allocation6], %s45
      %s47 = sshll.u32 [#allocation7], 4
      %s48 = int_to_ptr.vmem [resolvable:$true] %s47
      %53 = dma.hbm_to_vmem [thread:$0]  %s2, 1024, %s48, [#allocation6], 64, 64, 4
    $region13: #{tpu_custom_call.1} parent=1 // pred_fallthru
      _
    // Predicated region
    $region14: #{tpu_custom_call.1} parent=1 // pred_check
      _
    $region15: #{tpu_custom_call.1} parent=1 // pred_check_branch
      %55 = sbr.rel (0) target = $region17
    $region16: #{tpu_custom_call.1} parent=1 // pred_region
      _
    $region17: #{tpu_custom_call.1} parent=1 // pred_fallthru
      _
    // Predicated region
    $region18: #{tpu_custom_call.1} parent=1 // pred_check
      _
    $region19: #{tpu_custom_call.1} parent=1 // pred_check_branch
      %57 = sbr.rel (0) target = $region21
    $region20: #{tpu_custom_call.1} parent=1 // pred_region
      %s59 = ssub.s32 1024, 1024
      %60 = vsyncadd [#allocation9], %s59
      %s61 = sshll.u32 [#allocation8], 4
      %s62 = int_to_ptr.vmem [resolvable:$true] %s61
      %67 = dma.hbm_to_vmem [thread:$0]  %s4, 1024, %s62, [#allocation9], 64, 64, 4
    $region21: #{tpu_custom_call.1} parent=1 // pred_fallthru
      _
    // Predicated region
    $region22: #{tpu_custom_call.1} parent=1 // pred_check
      _
    $region23: #{tpu_custom_call.1} parent=1 // pred_check_branch
      %69 = sbr.rel (0) target = $region25
    $region24: #{tpu_custom_call.1} parent=1 // pred_region
      _
    $region25: #{tpu_custom_call.1} parent=1 // pred_fallthru
      _
    // Predicated region
    $region26: #{tpu_custom_call.1} parent=1 // pred_check
      _
    $region27: #{tpu_custom_call.1} parent=1 // pred_check_branch
      %71 = sbr.rel (0) target = $region29
    $region28: #{tpu_custom_call.1} parent=1 // pred_region
      %72 = dma.done [#allocation3], 512
    $region29: #{tpu_custom_call.1} parent=1 // pred_fallthru
      _
    // Predicated region
    $region30: #{tpu_custom_call.1} parent=1 // pred_check
      _
    $region31: #{tpu_custom_call.1} parent=1 // pred_check_branch
      %74 = sbr.rel (0) target = $region33
    $region32: #{tpu_custom_call.1} parent=1 // pred_region
      %75 = dma.done [#allocation6], 2048
    $region33: #{tpu_custom_call.1} parent=1 // pred_fallthru
      _
    // Predicated region
    $region34: #{tpu_custom_call.1} parent=1 // pred_check
      _
    $region35: #{tpu_custom_call.1} parent=1 // pred_check_branch
      %77 = sbr.rel (0) target = $region37
    $region36: #{tpu_custom_call.1} parent=1 // pred_region
      %78 = dma.done [#allocation6], 1024
    $region37: #{tpu_custom_call.1} parent=1 // pred_fallthru
      _
    // Predicated region
    $region38: #{tpu_custom_call.1} parent=1 // pred_check
      _
    $region39: #{tpu_custom_call.1} parent=1 // pred_check_branch
      %80 = sbr.rel (0) target = $region41
    $region40: #{tpu_custom_call.1} parent=1 // pred_region
      %81 = dma.done [#allocation9], 1024
    $region41: #{tpu_custom_call.1} parent=1 // pred_fallthru
      _
    %v83 = vld [vmem:[#allocation2] sm:$0xff]
    %v84 = vld [vmem:[#allocation2 + $0x8] sm:$0xff]
    %v85 = vld [vmem:[#allocation2 + $0x10] sm:$0xff]
    %v86 = vld [vmem:[#allocation2 + $0x18] sm:$0xff]
    %v87 = vpack.c.bf16 %v85, %v83
    %v88 = vpack.c.bf16 %v86, %v84
    %v89 = vld [vmem:[#allocation5] sm:$0xf]
    %v90 = vld [vmem:[#allocation5 + $0x4] sm:$0xf]
    %v91 = vld [vmem:[#allocation5 + $0x8] sm:$0xf]
    %v92 = vld [vmem:[#allocation5 + $0xc] sm:$0xf]
    %v93 = vld [vmem:[#allocation5 + $0x10] sm:$0xf]
    %v94 = vld [vmem:[#allocation5 + $0x14] sm:$0xf]
    %v95 = vld [vmem:[#allocation5 + $0x18] sm:$0xf]
    %v96 = vld [vmem:[#allocation5 + $0x1c] sm:$0xf]
    %v97 = vld [vmem:[#allocation5 + $0x20] sm:$0xf]
    %v98 = vld [vmem:[#allocation5 + $0x24] sm:$0xf]
    %v99 = vld [vmem:[#allocation5 + $0x28] sm:$0xf]
    %v100 = vld [vmem:[#allocation5 + $0x2c] sm:$0xf]
    %v101 = vld [vmem:[#allocation5 + $0x30] sm:$0xf]
    %v102 = vld [vmem:[#allocation5 + $0x34] sm:$0xf]
    %v103 = vld [vmem:[#allocation5 + $0x38] sm:$0xf]
    %v104 = vld [vmem:[#allocation5 + $0x3c] sm:$0xf]
    %v105 = vld [vmem:[#allocation5 + $0x40] sm:$0xf]
    %v106 = vld [vmem:[#allocation5 + $0x44] sm:$0xf]
    %v107 = vld [vmem:[#allocation5 + $0x48] sm:$0xf]
    %v108 = vld [vmem:[#allocation5 + $0x4c] sm:$0xf]
    %v109 = vld [vmem:[#allocation5 + $0x50] sm:$0xf]
    %v110 = vld [vmem:[#allocation5 + $0x54] sm:$0xf]
    %v111 = vld [vmem:[#allocation5 + $0x58] sm:$0xf]
    %v112 = vld [vmem:[#allocation5 + $0x5c] sm:$0xf]
    %v113 = vld [vmem:[#allocation5 + $0x60] sm:$0xf]
    %v114 = vld [vmem:[#allocation5 + $0x64] sm:$0xf]
    %v115 = vld [vmem:[#allocation5 + $0x68] sm:$0xf]
    %v116 = vld [vmem:[#allocation5 + $0x6c] sm:$0xf]
    %v117 = vld [vmem:[#allocation5 + $0x70] sm:$0xf]
    %v118 = vld [vmem:[#allocation5 + $0x74] sm:$0xf]
    %v119 = vld [vmem:[#allocation5 + $0x78] sm:$0xf]
    %v120 = vld [vmem:[#allocation5 + $0x7c] sm:$0xf]
    %v153 = vunpack.c.l.b16 %v89
    %v154 = vunpack.c.l.b16 %v90
    %v155 = vunpack.c.l.b16 %v91
    %v156 = vunpack.c.l.b16 %v92
    %v157 = vunpack.c.l.b16 %v93
    %v158 = vunpack.c.l.b16 %v94
    %v159 = vunpack.c.l.b16 %v95
    %v160 = vunpack.c.l.b16 %v96
    %v161 = vunpack.c.l.b16 %v97
    %v162 = vunpack.c.l.b16 %v98
    %v163 = vunpack.c.l.b16 %v99
    %v164 = vunpack.c.l.b16 %v100
    %v165 = vunpack.c.l.b16 %v101
    %v166 = vunpack.c.l.b16 %v102
    %v167 = vunpack.c.l.b16 %v103
    %v168 = vunpack.c.l.b16 %v104
    %v169 = vunpack.c.l.b16 %v105
    %v170 = vunpack.c.l.b16 %v106
    %v171 = vunpack.c.l.b16 %v107
    %v172 = vunpack.c.l.b16 %v108
    %v173 = vunpack.c.l.b16 %v109
    %v174 = vunpack.c.l.b16 %v110
    %v175 = vunpack.c.l.b16 %v111
    %v176 = vunpack.c.l.b16 %v112
    %v177 = vunpack.c.l.b16 %v113
    %v178 = vunpack.c.l.b16 %v114
    %v179 = vunpack.c.l.b16 %v115
    %v180 = vunpack.c.l.b16 %v116
    %v181 = vunpack.c.l.b16 %v117
    %v182 = vunpack.c.l.b16 %v118
    %v183 = vunpack.c.l.b16 %v119
    %v184 = vunpack.c.l.b16 %v120
    %v185 = vpack.c.b16 %v154, %v153
    %v186 = vpack.c.b16 %v156, %v155
    %v187 = vpack.c.b16 %v158, %v157
    %v188 = vpack.c.b16 %v160, %v159
    %v189 = vpack.c.b16 %v162, %v161
    %v190 = vpack.c.b16 %v164, %v163
    %v191 = vpack.c.b16 %v166, %v165
    %v192 = vpack.c.b16 %v168, %v167
    %v193 = vpack.c.b16 %v170, %v169
    %v194 = vpack.c.b16 %v172, %v171
    %v195 = vpack.c.b16 %v174, %v173
    %v196 = vpack.c.b16 %v176, %v175
    %v197 = vpack.c.b16 %v178, %v177
    %v198 = vpack.c.b16 %v180, %v179
    %v199 = vpack.c.b16 %v182, %v181
    %v200 = vpack.c.b16 %v184, %v183
    %217 = vmatprep.subr.bf16.mxu0 0
    %218 = vmatpush1.bf16.msra.mxu0 %v192
    %219 = vmatprep.subr.bf16.mxu0 0
    %220 = vmatpush1.bf16.msra.mxu0 %v191
    %221 = vmatprep.subr.bf16.mxu0 0
    %222 = vmatpush1.bf16.msra.mxu0 %v190
    %223 = vmatprep.subr.bf16.mxu0 0
    %224 = vmatpush1.bf16.msra.mxu0 %v189
    %225 = vmatprep.subr.bf16.mxu0 0
    %226 = vmatpush1.bf16.msra.mxu0 %v188
    %227 = vmatprep.subr.bf16.mxu0 0
    %228 = vmatpush1.bf16.msra.mxu0 %v187
    %229 = vmatprep.subr.bf16.mxu0 0
    %230 = vmatpush1.bf16.msra.mxu0 %v186
    %231 = vmatprep.subr.bf16.mxu0 0
    %232 = vmatpush1.bf16.msra.mxu0 %v185
    %233 = vmatprep.subr.bf16.mxu0 0
    %234 = vmatpush2.bf16.msra.mxu0 %v200
    %235 = vmatprep.subr.bf16.mxu0 0
    %236 = vmatpush2.bf16.msra.mxu0 %v199
    %237 = vmatprep.subr.bf16.mxu0 0
    %238 = vmatpush2.bf16.msra.mxu0 %v198
    %239 = vmatprep.subr.bf16.mxu0 0
    %240 = vmatpush2.bf16.msra.mxu0 %v197
    %241 = vmatprep.subr.bf16.mxu0 0
    %242 = vmatpush2.bf16.msra.mxu0 %v196
    %243 = vmatprep.subr.bf16.mxu0 0
    %244 = vmatpush2.bf16.msra.mxu0 %v195
    %245 = vmatprep.subr.bf16.mxu0 0
    %246 = vmatpush2.bf16.msra.mxu0 %v194
    %247 = vmatprep.subr.bf16.mxu0 0
    %248 = vmatpush2.bf16.msra.mxu0 %v193
    %249 = vmatprep.mubr.bf16.mxu0 %v88
    %250 = vmatmul.mubr.bf16.gmra.mxu0 %v87
    %v251 = vpop.f32.mrf.mxu0
    %v252 = vadd.f32 0.0, %v251
    %v253 = vpop.f32.mrf.mxu0
    %v254 = vpop.f32.mrf.mxu0
    %v255 = vadd.f32 0.0, %v254
    %v256 = vpop.f32.mrf.mxu0
    %257 = vdwg.mxu0
    %v258 = vmax.f32 %v252, 0.0
    %v259 = vmax.f32 %v255, 0.0
    %v260 = vpack.c.bf16 %v259, %v258
    %v261 = vld [vmem:[#allocation7] sm:$0xf]
    %v262 = vld [vmem:[#allocation7 + $0x4] sm:$0xf]
    %v263 = vld [vmem:[#allocation7 + $0x8] sm:$0xf]
    %v264 = vld [vmem:[#allocation7 + $0xc] sm:$0xf]
    %v265 = vld [vmem:[#allocation7 + $0x10] sm:$0xf]
    %v266 = vld [vmem:[#allocation7 + $0x14] sm:$0xf]
    %v267 = vld [vmem:[#allocation7 + $0x18] sm:$0xf]
    %v268 = vld [vmem:[#allocation7 + $0x1c] sm:$0xf]
    %v269 = vld [vmem:[#allocation7 + $0x20] sm:$0xf]
    %v270 = vld [vmem:[#allocation7 + $0x24] sm:$0xf]
    %v271 = vld [vmem:[#allocation7 + $0x28] sm:$0xf]
    %v272 = vld [vmem:[#allocation7 + $0x2c] sm:$0xf]
    %v273 = vld [vmem:[#allocation7 + $0x30] sm:$0xf]
    %v274 = vld [vmem:[#allocation7 + $0x34] sm:$0xf]
    %v275 = vld [vmem:[#allocation7 + $0x38] sm:$0xf]
    %v276 = vld [vmem:[#allocation7 + $0x3c] sm:$0xf]
    %v277 = vld [vmem:[%s3] sm:$0x1]
    %v279 = vlaneseq
    %v280 = vshrl.u32 %v279, 7
    %v281 = vsub.s32 0, %v280
    %v282 = vrot.slane %v277, %v281
    %v300 = vunpack.c.l.b16 %v261
    %v301 = vunpack.c.l.b16 %v262
    %v302 = vunpack.c.l.b16 %v263
    %v303 = vunpack.c.l.b16 %v264
    %v304 = vunpack.c.l.b16 %v265
    %v305 = vunpack.c.l.b16 %v266
    %v306 = vunpack.c.l.b16 %v267
    %v307 = vunpack.c.l.b16 %v268
    %v308 = vunpack.c.l.b16 %v269
    %v309 = vunpack.c.l.b16 %v270
    %v310 = vunpack.c.l.b16 %v271
    %v311 = vunpack.c.l.b16 %v272
    %v312 = vunpack.c.l.b16 %v273
    %v313 = vunpack.c.l.b16 %v274
    %v314 = vunpack.c.l.b16 %v275
    %v315 = vunpack.c.l.b16 %v276
    %v316 = vpack.c.b16 %v301, %v300
    %v317 = vpack.c.b16 %v303, %v302
    %v318 = vpack.c.b16 %v305, %v304
    %v319 = vpack.c.b16 %v307, %v306
    %v320 = vpack.c.b16 %v309, %v308
    %v321 = vpack.c.b16 %v311, %v310
    %v322 = vpack.c.b16 %v313, %v312
    %v323 = vpack.c.b16 %v315, %v314
    %332 = vmatprep.subr.bf16.mxu0 0
    %333 = vmatpush1.bf16.msra.mxu0 %v323
    %334 = vmatprep.subr.bf16.mxu0 0
    %335 = vmatpush1.bf16.msra.mxu0 %v322
    %336 = vmatprep.subr.bf16.mxu0 0
    %337 = vmatpush1.bf16.msra.mxu0 %v321
    %338 = vmatprep.subr.bf16.mxu0 0
    %339 = vmatpush1.bf16.msra.mxu0 %v320
    %340 = vmatprep.subr.bf16.mxu0 0
    %341 = vmatpush1.bf16.msra.mxu0 %v319
    %342 = vmatprep.subr.bf16.mxu0 0
    %343 = vmatpush1.bf16.msra.mxu0 %v318
    %344 = vmatprep.subr.bf16.mxu0 0
    %345 = vmatpush1.bf16.msra.mxu0 %v317
    %346 = vmatprep.subr.bf16.mxu0 0
    %347 = vmatpush1.bf16.msra.mxu0 %v316
    %348 = vmatprep.subr.bf16.mxu0 0
    %349 = vmatpush2.bf16.msra.mxu0 0
    %350 = vmatprep.subr.bf16.mxu0 0
    %351 = vmatpush2.bf16.msra.mxu0 0
    %352 = vmatprep.subr.bf16.mxu0 0
    %353 = vmatpush2.bf16.msra.mxu0 0
    %354 = vmatprep.subr.bf16.mxu0 0
    %355 = vmatpush2.bf16.msra.mxu0 0
    %356 = vmatprep.subr.bf16.mxu0 0
    %357 = vmatpush2.bf16.msra.mxu0 0
    %358 = vmatprep.subr.bf16.mxu0 0
    %359 = vmatpush2.bf16.msra.mxu0 0
    %360 = vmatprep.subr.bf16.mxu0 0
    %361 = vmatpush2.bf16.msra.mxu0 0
    %362 = vmatprep.subr.bf16.mxu0 0
    %363 = vmatpush2.bf16.msra.mxu0 0
    %364 = vmatprep.mubr.bf16.mxu0 0
    %365 = vmatmul.mubr.bf16.gmra.mxu0 %v260
    %v366 = vpop.f32.mrf.mxu0
    %v367 = vadd.f32 %v282, %v366
    %v368 = vpop.f32.mrf.mxu0
    %v369 = vpop.f32.mrf.mxu0
    %v370 = vadd.f32 %v282, %v369
    %v371 = vpop.f32.mrf.mxu0
    %372 = vdwg.mxu0
    %v373 = vmax.f32 %v367, 0.0
    %v374 = vmax.f32 %v370, 0.0
    %v375 = vpack.c.bf16 %v374, %v373
    %v376 = vld [vmem:[#allocation8] sm:$0xf]
    %v377 = vld [vmem:[#allocation8 + $0x4] sm:$0xf]
    %v378 = vld [vmem:[#allocation8 + $0x8] sm:$0xf]
    %v379 = vld [vmem:[#allocation8 + $0xc] sm:$0xf]
    %v380 = vld [vmem:[#allocation8 + $0x10] sm:$0xf]
    %v381 = vld [vmem:[#allocation8 + $0x14] sm:$0xf]
    %v382 = vld [vmem:[#allocation8 + $0x18] sm:$0xf]
    %v383 = vld [vmem:[#allocation8 + $0x1c] sm:$0xf]
    %v384 = vld [vmem:[#allocation8 + $0x20] sm:$0xf]
    %v385 = vld [vmem:[#allocation8 + $0x24] sm:$0xf]
    %v386 = vld [vmem:[#allocation8 + $0x28] sm:$0xf]
    %v387 = vld [vmem:[#allocation8 + $0x2c] sm:$0xf]
    %v388 = vld [vmem:[#allocation8 + $0x30] sm:$0xf]
    %v389 = vld [vmem:[#allocation8 + $0x34] sm:$0xf]
    %v390 = vld [vmem:[#allocation8 + $0x38] sm:$0xf]
    %v391 = vld [vmem:[#allocation8 + $0x3c] sm:$0xf]
    %v392 = vld [vmem:[%s5] sm:$0x1]
    %v394 = vlaneseq
    %v395 = vshrl.u32 %v394, 7
    %v396 = vsub.s32 0, %v395
    %v397 = vrot.slane %v392, %v396
    %v415 = vunpack.c.l.b16 %v376
    %v416 = vunpack.c.l.b16 %v377
    %v417 = vunpack.c.l.b16 %v378
    %v418 = vunpack.c.l.b16 %v379
    %v419 = vunpack.c.l.b16 %v380
    %v420 = vunpack.c.l.b16 %v381
    %v421 = vunpack.c.l.b16 %v382
    %v422 = vunpack.c.l.b16 %v383
    %v423 = vunpack.c.l.b16 %v384
    %v424 = vunpack.c.l.b16 %v385
    %v425 = vunpack.c.l.b16 %v386
    %v426 = vunpack.c.l.b16 %v387
    %v427 = vunpack.c.l.b16 %v388
    %v428 = vunpack.c.l.b16 %v389
    %v429 = vunpack.c.l.b16 %v390
    %v430 = vunpack.c.l.b16 %v391
    %v431 = vpack.c.b16 %v416, %v415
    %v432 = vpack.c.b16 %v418, %v417
    %v433 = vpack.c.b16 %v420, %v419
    %v434 = vpack.c.b16 %v422, %v421
    %v435 = vpack.c.b16 %v424, %v423
    %v436 = vpack.c.b16 %v426, %v425
    %v437 = vpack.c.b16 %v428, %v427
    %v438 = vpack.c.b16 %v430, %v429
    %447 = vmatprep.subr.bf16.mxu0 0
    %448 = vmatpush1.bf16.msra.mxu0 %v438
    %449 = vmatprep.subr.bf16.mxu0 0
    %450 = vmatpush1.bf16.msra.mxu0 %v437
    %451 = vmatprep.subr.bf16.mxu0 0
    %452 = vmatpush1.bf16.msra.mxu0 %v436
    %453 = vmatprep.subr.bf16.mxu0 0
    %454 = vmatpush1.bf16.msra.mxu0 %v435
    %455 = vmatprep.subr.bf16.mxu0 0
    %456 = vmatpush1.bf16.msra.mxu0 %v434
    %457 = vmatprep.subr.bf16.mxu0 0
    %458 = vmatpush1.bf16.msra.mxu0 %v433
    %459 = vmatprep.subr.bf16.mxu0 0
    %460 = vmatpush1.bf16.msra.mxu0 %v432
    %461 = vmatprep.subr.bf16.mxu0 0
    %462 = vmatpush1.bf16.msra.mxu0 %v431
    %463 = vmatprep.subr.bf16.mxu0 0
    %464 = vmatpush2.bf16.msra.mxu0 0
    %465 = vmatprep.subr.bf16.mxu0 0
    %466 = vmatpush2.bf16.msra.mxu0 0
    %467 = vmatprep.subr.bf16.mxu0 0
    %468 = vmatpush2.bf16.msra.mxu0 0
    %469 = vmatprep.subr.bf16.mxu0 0
    %470 = vmatpush2.bf16.msra.mxu0 0
    %471 = vmatprep.subr.bf16.mxu0 0
    %472 = vmatpush2.bf16.msra.mxu0 0
    %473 = vmatprep.subr.bf16.mxu0 0
    %474 = vmatpush2.bf16.msra.mxu0 0
    %475 = vmatprep.subr.bf16.mxu0 0
    %476 = vmatpush2.bf16.msra.mxu0 0
    %477 = vmatprep.subr.bf16.mxu0 0
    %478 = vmatpush2.bf16.msra.mxu0 0
    %479 = vmatprep.mubr.bf16.mxu0 0
    %480 = vmatmul.mubr.bf16.gmra.mxu0 %v375
    %v481 = vpop.f32.mrf.mxu0
    %v482 = vadd.f32 %v397, %v481
    %v483 = vpop.f32.mrf.mxu0
    %v484 = vpop.f32.mrf.mxu0
    %v485 = vadd.f32 %v397, %v484
    %v486 = vpop.f32.mrf.mxu0
    %487 = vdwg.mxu0
    %v488 = vxor.u32 %v482, 2147483648
    %v489 = vxor.u32 %v485, 2147483648
    %v490 = vmul.f32 %v488, 1.442695
    %v491 = vpow.pop %v490
    %v492 = vmul.f32 %v489, 1.442695
    %v493 = vpow.pop %v492
    %v494 = vadd.f32 %v491, 1.0
    %v495 = vadd.f32 %v493, 1.0
    %v496 = vrcp.pop %v494
    %v497 = vmul.f32 1.0, %v496
    %v498 = vrcp.pop %v495
    %v499 = vmul.f32 1.0, %v498
    %v500 = vpack.c.bf16 %v499, %v497
    %v502 = vunpack.c.l.b16 %v500
    %v503 = vunpack.c.h.b16 %v500
    %v504 = vpack.c.b16 %v502, %v502
    %v505 = vpack.c.b16 %v503, %v503
    %508 = vst [vmem:[#allocation10] sm:$0xf] %v504
    %509 = vst [vmem:[#allocation10 + $0x4] sm:$0xf] %v505
    %v510 = vlaneseq
    %v511 = vand.u32 %v510, 127
    %vm512 = vcmp.lt.s32.totalorder %v511, 4
    %v513 = vsel %vm512, %v482, -1e+30
    %v514 = vsel %vm512, %v485, -1e+30
    %515 = vmax.xlane.f32.xlu0 %v513
    %v516 = vpop.xlane.xlu0 %515
    %517 = vmax.xlane.f32.xlu0 %v514
    %v518 = vpop.xlane.xlu0 %517
    %vm519 = vcmp.ge.f32.partialorder %v513, %v516
    %vm520 = vcmp.ge.f32.partialorder %v514, %v518
    %v521 = vcvt.s32.f32 %v511
    %v522 = vsel %vm519, %v521, 128.0
    %v523 = vsel %vm520, %v521, 128.0
    %524 = vmin.xlane.f32.xlu0 %v522
    %v525 = vpop.xlane.xlu0 %524
    %526 = vmin.xlane.f32.xlu0 %v523
    %v527 = vpop.xlane.xlu0 %526
    %v528 = vcvt.f32.s32.to.zero.pseudo %v525
    %v529 = vcvt.f32.s32.to.zero.pseudo %v527
    %vm530 = vcmask 7168
    %531 = vst.msk [vmem:[%s7] sm:$0xff] %vm530, %v528
    %532 = vst.msk [vmem:[%s7 + $0x8] sm:$0xff] %vm530, %v529
    %vm533 = vcmp.gt.f32.partialorder %v516, 0.0
    %vm534 = vcmp.gt.f32.partialorder %v518, 0.0
    %v535 = vsel %vm533, 1, 0
    %v536 = vsel %vm534, 1, 0
    %537 = vst.msk [vmem:[%s8] sm:$0xff] %vm530, %v535
    %538 = vst.msk [vmem:[%s8 + $0x8] sm:$0xff] %vm530, %v536
    // Predicated region
    $region42: #{tpu_custom_call.1} parent=1 // pred_check
      _
    $region43: #{tpu_custom_call.1} parent=1 // pred_check_branch
      %540 = sbr.rel (0) target = $region45
    $region44: #{tpu_custom_call.1} parent=1 // pred_region
      %s542 = ssub.s32 128, 128
      %543 = vsyncadd [#allocation4], %s542
      %s544 = sshll.u32 [#allocation10], 4
      %s545 = int_to_ptr.vmem [resolvable:$true] %s544
      %550 = dma.vmem_to_hbm [thread:$0]  %s545, 128, %s6, [#allocation4], 64, 64, 4
    $region45: #{tpu_custom_call.1} parent=1 // pred_fallthru
      _
    // Predicated region
    $region46: #{tpu_custom_call.1} parent=1 // pred_check
      _
    $region47: #{tpu_custom_call.1} parent=1 // pred_check_branch
      %552 = sbr.rel (0) target = $region49
    $region48: #{tpu_custom_call.1} parent=1 // pred_region
      _
    $region49: #{tpu_custom_call.1} parent=1 // pred_fallthru
      _
    // Predicated region
    $region50: #{tpu_custom_call.1} parent=1 // pred_check
      _
    $region51: #{tpu_custom_call.1} parent=1 // pred_check_branch
      %554 = sbr.rel (0) target = $region53
    $region52: #{tpu_custom_call.1} parent=1 // pred_region
      _
    $region53: #{tpu_custom_call.1} parent=1 // pred_fallthru
      _
    // Predicated region
    $region54: #{tpu_custom_call.1} parent=1 // pred_check
      _
    $region55: #{tpu_custom_call.1} parent=1 // pred_check_branch
      %556 = sbr.rel (0) target = $region57
    $region56: #{tpu_custom_call.1} parent=1 // pred_region
      %557 = dma.done [#allocation4], 128
    $region57: #{tpu_custom_call.1} parent=1 // pred_fallthru
      _
    // Predicated region
    $region58: #{tpu_custom_call.1} parent=1 // pred_check
      _
    $region59: #{tpu_custom_call.1} parent=1 // pred_check_branch
      %559 = sbr.rel (0) target = $region61
    $region60: #{tpu_custom_call.1} parent=1 // pred_region
      _
    $region61: #{tpu_custom_call.1} parent=1 // pred_fallthru
      _
    // Predicated region
    $region62: #{tpu_custom_call.1} parent=1 // pred_check
      _
    $region63: #{tpu_custom_call.1} parent=1 // pred_check_branch
      %561 = sbr.rel (0) target = $region65
    $region64: #{tpu_custom_call.1} parent=1 // pred_region
      _
    $region65: #{tpu_custom_call.1} parent=1 // pred_fallthru
      _
    %562 = vsyncpa [#allocation3], 1
    %563 = vsyncpa [#allocation6], 1
    %564 = vsyncpa [#allocation9], 1
    %565 = vsyncpa [#allocation4], 1

</llo_original>
